<compile_context>
chip_gen: v7x
topology: tpu7x:2x2x1
jax: 0.10.0
libtpu: 0.0.40
codegen_flags: <defaults>
</compile_context>

<pallas_src>
import functools

import jax
import jax.numpy as jnp
from jax.experimental import pallas as pl
from jax.experimental.pallas import tpu as pltpu

# ---- packed-slab layout (all rows are 128 f32 lanes wide) --------------------
LANES = 128          # padded feature width (hidden / action dims live in lanes)
STATE_ROWS = 8       # padded state feature dim (one sublane tile)
BIAS_ROWS = 8        # one sublane tile holding the three bias rows
TM_MAX = 128         # max batch rows per grid block
NEG_BIG = -1e30      # bias for padded logit lanes -> exp == 0 in softmax

# Slab row map (hpad = hidden_dim rounded up to a multiple of 8):
#   rows [0, 8)                      : fused W01 = Wi @ W1, state rows zero-padded
#   rows [8, 16)                     : bias tile; row 8 = bi@W1+b1, row 9 = b2,
#                                      row 10 = bf (-1e30 in padded action lanes)
#   rows [16, 16+hpad)               : W2  (hidden_dim real rows)
#   rows [16+hpad, 16+2*hpad)        : Wf  (hidden_dim real rows)


def _round_up(x, m):
    return ((x + m - 1) // m) * m


def slab_rows(hidden_dim):
    hpad = _round_up(max(hidden_dim, 1), 8)
    return STATE_ROWS + BIAS_ROWS + 2 * hpad


def actor_kernel(x_ref, p_ref, out_ref):
    # Layout constants are recovered from the (static) slab block shape.
    rows = p_ref.shape[0]
    hpad = (rows - STATE_ROWS - BIAS_ROWS) // 2
    w2_off = STATE_ROWS + BIAS_ROWS
    wf_off = w2_off + hpad

    x = x_ref[...]                                    # (TM, 8) zero-padded state

    w01 = p_ref[0:STATE_ROWS, :]                      # (8, 128)   fused Wi@W1
    btile = p_ref[STATE_ROWS:STATE_ROWS + BIAS_ROWS, :]   # single (8,128) read
    b01 = btile[0:1, :]                               # (1, 128)  bi@W1 + b1
    b2 = btile[1:2, :]                                # (1, 128)  b2
    bf = btile[2:3, :]                                # (1, 128)  bf (-1e30 pad)
    w2 = p_ref[w2_off:w2_off + hpad, :]               # (hpad, 128)
    wf = p_ref[wf_off:wf_off + hpad, :]               # (hpad, 128)

    # fused fci + fc1, then ReLU.  Padded lanes of h stay exactly 0.
    h = jnp.dot(x, w01, preferred_element_type=jnp.float32) + b01
    h = jnp.maximum(h, 0.0)

    # fc2 + LeakyReLU(0.01); contract only the hpad meaningful lanes of h.
    h = jnp.dot(h[:, :hpad], w2, preferred_element_type=jnp.float32) + b2
    h = jnp.where(h > 0.0, h, 0.01 * h)

    # fcf + numerically-stable softmax over the 128 padded lanes
    # (padded lanes carry a -1e30 bias -> exp == 0, so this equals the softmax
    #  over the real action_dim lanes).
    logits = jnp.dot(h[:, :hpad], wf, preferred_element_type=jnp.float32) + bf
    m = jnp.max(logits, axis=-1, keepdims=True)
    e = jnp.exp(logits - m)
    denom = jnp.sum(e, axis=-1, keepdims=True)
    # EUP approximate reciprocal + one Newton-Raphson refinement (~f32 accurate).
    inv = pl.reciprocal(denom, approx=True)
    inv = inv * (2.0 - denom * inv)
    out_ref[...] = e * inv                            # (TM, 128) lane-dense store


def pack_params(params, state_dim, hidden_dim, action_dim):
    """Fuse fci+fc1 and pack all parameters into one (16 + 2*hpad, 128) f32 slab."""
    assert state_dim <= STATE_ROWS
    assert hidden_dim <= LANES and action_dim <= LANES
    rows = slab_rows(hidden_dim)
    hpad = (rows - STATE_ROWS - BIAS_ROWS) // 2
    w2_off = STATE_ROWS + BIAS_ROWS
    wf_off = w2_off + hpad
    hp = jax.lax.Precision.HIGHEST

    # fci has no activation, so fc1(fci(x)) == x @ (Wi@W1) + (bi@W1 + b1).
    w01 = jnp.dot(params["wi"], params["w1"], precision=hp)                 # (S, H)
    b01 = jnp.dot(params["bi"], params["w1"], precision=hp) + params["b1"]  # (1, H)

    slab = jnp.zeros((rows, LANES), jnp.float32)
    slab = slab.at[:state_dim, :hidden_dim].set(w01)
    slab = slab.at[STATE_ROWS + 0, :hidden_dim].set(b01[0])
    slab = slab.at[STATE_ROWS + 1, :hidden_dim].set(params["b2"][0])
    bf_row = jnp.full((LANES,), NEG_BIG, jnp.float32).at[:action_dim].set(params["bf"][0])
    slab = slab.at[STATE_ROWS + 2, :].set(bf_row)
    slab = slab.at[w2_off:w2_off + hidden_dim, :hidden_dim].set(params["w2"])
    slab = slab.at[wf_off:wf_off + hidden_dim, :action_dim].set(params["wf"])
    return slab


@functools.partial(jax.jit, static_argnames=("action_dim",))
def actor_forward(state, packed_slab, *, action_dim):
    """state: (B, state_dim) f32; packed_slab: output of pack_params."""
    B, s_dim = state.shape
    rows = packed_slab.shape[0]

    # Row-block size: multiple of 8, capped at 128 (one MXU M-tile).
    tm = min(TM_MAX, _round_up(B, 8))
    b_pad = _round_up(B, tm)

    # Pad state to (b_pad, 8); padded rows/lanes are zero and simply discarded.
    state_pad = jnp.zeros((b_pad, STATE_ROWS), jnp.float32)
    state_pad = state_pad.at[:B, :s_dim].set(state)

    out_pad = pl.pallas_call(
        actor_kernel,
        out_shape=jax.ShapeDtypeStruct((b_pad, LANES), jnp.float32),
        grid=(b_pad // tm,),
        in_specs=[
            pl.BlockSpec((tm, STATE_ROWS), lambda i: (i, 0)),
            # Constant block index -> slab DMA'd once, stays VMEM-resident.
            pl.BlockSpec((rows, LANES), lambda i: (0, 0)),
        ],
        out_specs=pl.BlockSpec((tm, LANES), lambda i: (i, 0)),
        compiler_params=pltpu.CompilerParams(
            dimension_semantics=("parallel",)),  # v7x: shard blocks over both TCs
    )(state_pad, packed_slab)
    return out_pad[:B, :action_dim]


def init_params(key, state_dim, hidden_dim, action_dim):
    """Deterministic synthetic init (PyTorch-Linear-like uniform fan_in scaling)."""
    def linear(key, fan_in, fan_out):
        kw, kb = jax.random.split(key)
        bound = 1.0 / jnp.sqrt(fan_in)
        w = jax.random.uniform(kw, (fan_in, fan_out), jnp.float32, -bound, bound)
        b = jax.random.uniform(kb, (1, fan_out), jnp.float32, -bound, bound)
        return w, b

    ki, k1, k2, kf = jax.random.split(key, 4)
    wi, bi = linear(ki, state_dim, hidden_dim)
    w1, b1 = linear(k1, hidden_dim, hidden_dim)
    w2, b2 = linear(k2, hidden_dim, hidden_dim)
    wf, bf = linear(kf, hidden_dim, action_dim)
    return {"wi": wi, "bi": bi, "w1": w1, "b1": b1,
            "w2": w2, "b2": b2, "wf": wf, "bf": bf}


def actor_forward_ref(state, p):
    """Pure-JAX reference of the original (unfused) forward pass."""
    dot = functools.partial(jnp.dot, precision=jax.lax.Precision.HIGHEST)
    h = dot(state, p["wi"]) + p["bi"]
    h = jnp.maximum(dot(h, p["w1"]) + p["b1"], 0.0)
    h = dot(h, p["w2"]) + p["b2"]
    h = jnp.where(h > 0.0, h, 0.01 * h)
    logits = dot(h, p["wf"]) + p["bf"]
    return jax.nn.softmax(logits, axis=-1)


if __name__ == "__main__":
    # Small shapes consistent with the module: gridworld state -> hidden -> actions.
    state_dim, hidden_dim, action_dim = 4, 32, 4

    key = jax.random.PRNGKey(0)
    k_params, k_state_big, k_state_small = jax.random.split(key, 3)
    params = init_params(k_params, state_dim, hidden_dim, action_dim)
    packed = pack_params(params, state_dim, hidden_dim, action_dim)

    # Batched rollout-style call: B=256 -> TM=128, grid=(2,), both v7x TCs busy.
    state_big = jax.random.normal(k_state_big, (256, state_dim), dtype=jnp.float32)
    out_big = jax.block_until_ready(
        actor_forward(state_big, packed, action_dim=action_dim))
    ref_big = actor_forward_ref(state_big, params)
    assert out_big.shape == (256, action_dim)
    assert jnp.allclose(out_big, ref_big, atol=1e-4, rtol=1e-4)
    assert jnp.allclose(jnp.sum(out_big, axis=-1), 1.0, atol=1e-4)

    # Small per-step call: B=5 exercises the sub-tile (TM=8) padding path.
    state_small = jax.random.normal(k_state_small, (5, state_dim), dtype=jnp.float32)
    out_small = jax.block_until_ready(
        actor_forward(state_small, packed, action_dim=action_dim))
    ref_small = actor_forward_ref(state_small, params)
    assert out_small.shape == (5, action_dim)
    assert jnp.allclose(out_small, ref_small, atol=1e-4, rtol=1e-4)
    assert jnp.allclose(jnp.sum(out_small, axis=-1), 1.0, atol=1e-4)

    # TODO(synk): temperature_scaled_softmax is a standalone utility (not part of
    # forward); left to plain JAX at the call site if needed.
    print("KERNEL_OK")
</pallas_src>

<mosaic_0001>
module attributes {stable_mosaic.version = 11 : i64} {
  func.func @actor_kernel(%arg0: i32, %arg1: memref<128x8xf32, #tpu.memory_space<vmem>>, %arg2: memref<80x128xf32, #tpu.memory_space<vmem>>, %arg3: memref<128x128xf32, #tpu.memory_space<vmem>>) attributes {dimension_semantics = [#tpu.dimension_semantics<parallel>], iteration_bounds = array<i64: 2>, scalar_prefetch = 0 : i64, scratch_operands = 0 : i64, tpu.core_type = #tpu.core_type<tc>, window_params = [{transform_indices = @transform_0, window_bounds = array<i64: 128, 8>}, {pipeline_mode = #tpu.pipeline_mode<synchronous>, transform_indices = @transform_1, window_bounds = array<i64: 80, 128>}, {transform_indices = @transform_2, window_bounds = array<i64: 128, 128>}]} {
    %c0 = arith.constant 0 : index
    %c0_0 = arith.constant 0 : index
    %0 = vector.load %arg1[%c0, %c0_0] : memref<128x8xf32, #tpu.memory_space<vmem>>, vector<128x8xf32>
    %c0_1 = arith.constant 0 : index
    %c0_2 = arith.constant 0 : index
    %1 = vector.load %arg2[%c0_1, %c0_2] : memref<80x128xf32, #tpu.memory_space<vmem>>, vector<8x128xf32>
    %c8 = arith.constant 8 : index
    %c0_3 = arith.constant 0 : index
    %2 = vector.load %arg2[%c8, %c0_3] : memref<80x128xf32, #tpu.memory_space<vmem>>, vector<8x128xf32>
    %3 = vector.extract_strided_slice %2 {offsets = [0, 0], sizes = [1, 128], strides = [1, 1]} : vector<8x128xf32> to vector<1x128xf32>
    %4 = vector.extract_strided_slice %2 {offsets = [1, 0], sizes = [1, 128], strides = [1, 1]} : vector<8x128xf32> to vector<1x128xf32>
    %5 = vector.extract_strided_slice %2 {offsets = [2, 0], sizes = [1, 128], strides = [1, 1]} : vector<8x128xf32> to vector<1x128xf32>
    %c16 = arith.constant 16 : index
    %c0_4 = arith.constant 0 : index
    %6 = vector.load %arg2[%c16, %c0_4] : memref<80x128xf32, #tpu.memory_space<vmem>>, vector<32x128xf32>
    %c48 = arith.constant 48 : index
    %c0_5 = arith.constant 0 : index
    %7 = vector.load %arg2[%c48, %c0_5] : memref<80x128xf32, #tpu.memory_space<vmem>>, vector<32x128xf32>
    %cst = arith.constant dense<0.000000e+00> : vector<128x128xf32>
    %8 = tpu.matmul %0, %1, %cst {dimension_numbers = #tpu.dot_dimension_numbers<[1], [0], [0], [1], [0, 0, 1, 1], [], []>} : vector<128x8xf32>, vector<8x128xf32>, vector<128x128xf32> -> vector<128x128xf32>
    %9 = vector.broadcast %3 : vector<1x128xf32> to vector<128x128xf32>
    %10 = arith.addf %8, %9 : vector<128x128xf32>
    %cst_6 = arith.constant 0.000000e+00 : f32
    %11 = vector.broadcast %cst_6 : f32 to vector<128x128xf32>
    %12 = arith.maximumf %10, %11 : vector<128x128xf32>
    %13 = vector.extract_strided_slice %12 {offsets = [0, 0], sizes = [128, 32], strides = [1, 1]} : vector<128x128xf32> to vector<128x32xf32>
    %cst_7 = arith.constant dense<0.000000e+00> : vector<128x128xf32>
    %14 = tpu.matmul %13, %6, %cst_7 {dimension_numbers = #tpu.dot_dimension_numbers<[1], [0], [0], [1], [0, 0, 1, 1], [], []>} : vector<128x32xf32>, vector<32x128xf32>, vector<128x128xf32> -> vector<128x128xf32>
    %15 = vector.broadcast %4 : vector<1x128xf32> to vector<128x128xf32>
    %16 = arith.addf %14, %15 : vector<128x128xf32>
    %cst_8 = arith.constant 0.000000e+00 : f32
    %17 = vector.broadcast %cst_8 : f32 to vector<128x128xf32>
    %18 = arith.cmpf ogt, %16, %17 : vector<128x128xf32>
    %cst_9 = arith.constant 0.00999999977 : f32
    %19 = vector.broadcast %cst_9 : f32 to vector<128x128xf32>
    %20 = arith.mulf %19, %16 : vector<128x128xf32>
    %21 = arith.select %18, %16, %20 : vector<128x128xi1>, vector<128x128xf32>
    %22 = vector.extract_strided_slice %21 {offsets = [0, 0], sizes = [128, 32], strides = [1, 1]} : vector<128x128xf32> to vector<128x32xf32>
    %cst_10 = arith.constant dense<0.000000e+00> : vector<128x128xf32>
    %23 = tpu.matmul %22, %7, %cst_10 {dimension_numbers = #tpu.dot_dimension_numbers<[1], [0], [0], [1], [0, 0, 1, 1], [], []>} : vector<128x32xf32>, vector<32x128xf32>, vector<128x128xf32> -> vector<128x128xf32>
    %24 = vector.broadcast %5 : vector<1x128xf32> to vector<128x128xf32>
    %25 = arith.addf %23, %24 : vector<128x128xf32>
    %cst_11 = arith.constant dense<0xFF800000> : vector<128xf32>
    %26 = vector.multi_reduction <maximumf>, %25, %cst_11 [1] : vector<128x128xf32> to vector<128xf32>
    %27 = vector.shape_cast %26 : vector<128xf32> to vector<128x1xf32>
    %28 = vector.broadcast %27 : vector<128x1xf32> to vector<128x128xf32>
    %29 = arith.subf %25, %28 : vector<128x128xf32>
    %30 = math.exp %29 : vector<128x128xf32>
    %cst_12 = arith.constant dense<0.000000e+00> : vector<128xf32>
    %31 = vector.multi_reduction <add>, %30, %cst_12 [1] : vector<128x128xf32> to vector<128xf32>
    %32 = vector.shape_cast %31 : vector<128xf32> to vector<128x1xf32>
    %33 = tpu.reciprocal %32 {approx = true} : vector<128x1xf32> -> vector<128x1xf32>
    %34 = arith.mulf %32, %33 : vector<128x1xf32>
    %cst_13 = arith.constant 2.000000e+00 : f32
    %35 = vector.broadcast %cst_13 : f32 to vector<128x1xf32>
    %36 = arith.subf %35, %34 : vector<128x1xf32>
    %37 = arith.mulf %33, %36 : vector<128x1xf32>
    %38 = vector.broadcast %37 : vector<128x1xf32> to vector<128x128xf32>
    %39 = arith.mulf %30, %38 : vector<128x128xf32>
    %c0_14 = arith.constant 0 : index
    %c0_15 = arith.constant 0 : index
    %40 = vector.load %arg3[%c0_14, %c0_15] : memref<128x128xf32, #tpu.memory_space<vmem>>, vector<128x128xf32>
    tpu.vector_store %arg3[%c0_14, %c0_15], %39 {strides = array<i32>} : memref<128x128xf32, #tpu.memory_space<vmem>>, vector<128x128xf32>,
    return
  }
  func.func @transform_0(%arg0: i32) -> (i32, i32) {
    %c0_i32 = arith.constant 0 : i32
    %c0_i32_0 = arith.constant 0 : i32
    return %arg0, %c0_i32 : i32, i32
  }
  func.func @transform_1(%arg0: i32) -> (i32, i32) {
    %c0_i32 = arith.constant 0 : i32
    %c0_i32_0 = arith.constant 0 : i32
    %c0_i32_1 = arith.constant 0 : i32
    return %c0_i32, %c0_i32_0 : i32, i32
  }
  func.func @transform_2(%arg0: i32) -> (i32, i32) {
    %c0_i32 = arith.constant 0 : i32
    %c0_i32_0 = arith.constant 0 : i32
    return %arg0, %c0_i32 : i32, i32
  }
}

</mosaic_0001>

<llo_original>
// kernel: actor_forward.1
$region0: #{actor_forward.1}
  #allocation0 [shape = 'u32[]', space=smem, size = 0x4, offset = 0x4, fixed_abs, tag = 'smem constant byte address 0x4 - core index']
  #allocation1 [shape = 'u32[144,128]{1,0:T(1,128)}', space=vmem, size = 0x12000, scoped, tag = 'internal scratch']
  %s0 = inlined_call_operand.vmem [shape: f32[256,8], index: 0, kind: input, shape index: {}]
  %s1 = inlined_call_operand.vmem [shape: f32[80,128], index: 1, kind: input, shape index: {}]
  %s2 = inlined_call_operand.vmem [shape: f32[256,128], index: 2, kind: output, shape index: {}]
  %s3 = sld [smem:[#allocation0]]
  $region41: #{actor_forward.1} parent=0
    _
  %s5 = ssub.s32 1, %s3
  %s6 = scalar_select 0, %s5, %s3
  loop: start=0, step=1, limit=4
  $region2: #{actor_forward.1} parent=0 // loop_pre_header
    _
  $region3: #{actor_forward.1} parent=0 // loop_header
    %s8 = sphi 0, %s12
    %p9 = scmp.ge.s32.totalorder %s8, 4
    %s18 = sphi 0, %s20
    %s21 = sphi 0, %s18
    %s22 = sphi 0, %s21
    %s38 = sphi 0, %s22
    %s42 = sphi 0, %s42
    %s44 = sphi 0, %s42
    %s45 = sphi 0, %s44
    %s59 = sphi 0, %s45
    %s65 = sphi 0, %s67
    %s68 = sphi 0, %s65
    %s69 = sphi 0, %s68
    %s85 = sphi 0, %s69
  $region4: #{actor_forward.1} parent=0 // loop_header_branch
    %11 = sbr.rel (%p9) target = $region8
  $region5: #{actor_forward.1} parent=0 // loop_body
    %s13 = ssub.s32 %s8, 1
    %s14 = ssub.s32 %s8, 2
    %s15 = sadd.s32 %s8, 1
    %s16 = ssub.s32 %s8, %s15
    %p17 = scmp.eq.s32.totalorder %s16, 0
    %s19 = sadd.s32 %s18, 1
    %s20 = scalar_select %p17, %s18, %s19
    %p23 = pneg %p17
    %p24 = scmp.eq.s32.totalorder %s8, 1
    %p25 = por %p23, %p24
    %p26 = scmp.ne.s32.totalorder %s18, %s21
    %p27 = scmp.eq.s32.totalorder %s8, 0
    %p28 = por %p26, %p27
    %p29 = scmp.ne.s32.totalorder %s18, %s21
    %p30 = scmp.eq.s32.totalorder %s13, 1
    %p31 = por %p29, %p30
    %p32 = scmp.ne.s32.totalorder %s21, %s22
    %p33 = scmp.eq.s32.totalorder %s13, 0
    %p34 = por %p32, %p33
    %p35 = scmp.ne.s32.totalorder %s21, %s22
    %p36 = scmp.eq.s32.totalorder %s14, 1
    %p37 = por %p35, %p36
    %p39 = scmp.ne.s32.totalorder %s22, %s38
    %p40 = scmp.eq.s32.totalorder %s14, 0
    %p41 = por %p39, %p40
    %s43 = sadd.s32 %s42, 1
    %p46 = scmp.eq.s32.totalorder %s8, 1
    %p47 = scmp.ne.s32.totalorder %s42, %s44
    %p48 = scmp.eq.s32.totalorder %s8, 0
    %p49 = por %p47, %p48
    %p50 = scmp.ne.s32.totalorder %s42, %s44
    %p51 = scmp.eq.s32.totalorder %s13, 1
    %p52 = por %p50, %p51
    %p53 = scmp.ne.s32.totalorder %s44, %s45
    %p54 = scmp.eq.s32.totalorder %s13, 0
    %p55 = por %p53, %p54
    %p56 = scmp.ne.s32.totalorder %s44, %s45
    %p57 = scmp.eq.s32.totalorder %s14, 1
    %p58 = por %p56, %p57
    %p60 = scmp.ne.s32.totalorder %s45, %s59
    %p61 = scmp.eq.s32.totalorder %s14, 0
    %p62 = por %p60, %p61
    %s63 = ssub.s32 %s8, %s15
    %p64 = scmp.eq.s32.totalorder %s63, 0
    %s66 = sadd.s32 %s65, 1
    %s67 = scalar_select %p64, %s65, %s66
    %p70 = pneg %p64
    %p71 = scmp.eq.s32.totalorder %s8, 1
    %p72 = por %p70, %p71
    %p73 = scmp.ne.s32.totalorder %s65, %s68
    %p74 = scmp.eq.s32.totalorder %s8, 0
    %p75 = por %p73, %p74
    %p76 = scmp.ne.s32.totalorder %s65, %s68
    %p77 = scmp.eq.s32.totalorder %s13, 1
    %p78 = por %p76, %p77
    %p79 = scmp.ne.s32.totalorder %s68, %s69
    %p80 = scmp.eq.s32.totalorder %s13, 0
    %p81 = por %p79, %p80
    %p82 = scmp.ne.s32.totalorder %s68, %s69
    %p83 = scmp.eq.s32.totalorder %s14, 1
    %p84 = por %p82, %p83
    %p86 = scmp.ne.s32.totalorder %s69, %s85
    %p87 = scmp.eq.s32.totalorder %s14, 0
    %p88 = por %p86, %p87
    %p89 = scmp.le.s32.totalorder 1, %s8
    %p90 = scmp.lt.s32.totalorder %s8, 3
    %p91 = pnand %p89, %p90
    %p92 = pneg %p91
    // Predicated region
    $region9: #{actor_forward.1} parent=5 // pred_check
      _
    $region10: #{actor_forward.1} parent=5 // pred_check_branch
      %94 = sbr.rel (%p91) target = $region12
    $region11: #{actor_forward.1} parent=5 // pred_region
      %s95 = ssub.s32 %s8, 1
      // Predicated region
      $region13: #{actor_forward.1} parent=11 // pred_check
        %p96 = pneg %p55
      $region14: #{actor_forward.1} parent=11 // pred_check_branch
        %98 = sbr.rel (%p96) target = $region16
      $region15: #{actor_forward.1} parent=11 // pred_region
        _
      $region16: #{actor_forward.1} parent=11 // pred_fallthru
        _
    $region12: #{actor_forward.1} parent=5 // pred_fallthru
      _
    %p99 = scmp.lt.s32.totalorder %s8, 2
    // Predicated region
    $region17: #{actor_forward.1} parent=5 // pred_check
      %p100 = pneg %p99
    $region18: #{actor_forward.1} parent=5 // pred_check_branch
      %102 = sbr.rel (%p100) target = $region20
    $region19: #{actor_forward.1} parent=5 // pred_region
      // Predicated region
      $region21: #{actor_forward.1} parent=19 // pred_check
        %p103 = pneg %p28
      $region22: #{actor_forward.1} parent=19 // pred_check_branch
        %105 = sbr.rel (%p103) target = $region24
      $region23: #{actor_forward.1} parent=19 // pred_region
        %s106 = smul.u32 16, %s8
        %p107 = scmp.lt.s32.totalorder %s106, 31
        %s108 = scalar_select %p107, %s106, 31
        %s109 = smul.addr %s108, 8
        %s110 = scalar_lea.vmem %s0, %s109
        %s111 = smul.u32 16, %s8
      $region24: #{actor_forward.1} parent=19 // pred_fallthru
        _
    $region20: #{actor_forward.1} parent=5 // pred_fallthru
      _
    %p112 = scmp.le.s32.totalorder 1, %s8
    %p113 = scmp.lt.s32.totalorder %s8, 3
    %p114 = pnand %p112, %p113
    %p115 = pneg %p114
    // Predicated region
    $region25: #{actor_forward.1} parent=5 // pred_check
      _
    $region26: #{actor_forward.1} parent=5 // pred_check_branch
      %117 = sbr.rel (%p114) target = $region28
    $region27: #{actor_forward.1} parent=5 // pred_region
      %s118 = ssub.s32 %s8, 1
      %s119 = smul.u32 16, %s13
      %p120 = scmp.lt.s32.totalorder %s119, 31
      %s121 = scalar_select %p120, %s119, 31
      %s122 = smul.addr %s121, 8
      %s123 = scalar_lea.vmem %s0, %s122
      %p124 = pneg %p34
      %p125 = pneg %p31
      %p126 = pneg %p55
      %p127 = pneg %p52
      %p128 = pneg %p81
      %p129 = pneg %p78
      %s130 = smul.u32 16, %s13
      %p131 = scmp.lt.s32.totalorder %s130, 31
      %s132 = scalar_select %p131, %s130, 31
      %s133 = smul.addr %s132, 8
      %s134 = scalar_lea.vmem %s2, %s133
      %s135 = smul.u32 16, %s13
      %p136 = scmp.lt.s32.totalorder %s135, 31
      %s137 = scalar_select %p136, %s135, 31
      %s138 = smul.addr %s137, 8
      %s139 = scalar_lea.vmem %s0, %s138
      %s140 = smul.u32 16, %s13
      %s141 = smul.u32 16, %s13
      %p142 = scmp.lt.s32.totalorder %s141, 31
      %s143 = scalar_select %p142, %s141, 31
      %s144 = smul.addr %s143, 8
      %s145 = scalar_lea.vmem %s2, %s144
      %s146 = smul.u32 16, %s13
      %v147 = vld [vmem:[%s139] sm:$0xff]
      %v148 = vld [vmem:[%s139 + $0x8] sm:$0xff]
      %v149 = vld [vmem:[%s139 + $0x10] sm:$0xff]
      %v150 = vld [vmem:[%s139 + $0x18] sm:$0xff]
      %v151 = vld [vmem:[%s139 + $0x20] sm:$0xff]
      %v152 = vld [vmem:[%s139 + $0x28] sm:$0xff]
      %v153 = vld [vmem:[%s139 + $0x30] sm:$0xff]
      %v154 = vld [vmem:[%s139 + $0x38] sm:$0xff]
      %v155 = vld [vmem:[%s139 + $0x40] sm:$0xff]
      %v156 = vld [vmem:[%s139 + $0x48] sm:$0xff]
      %v157 = vld [vmem:[%s139 + $0x50] sm:$0xff]
      %v158 = vld [vmem:[%s139 + $0x58] sm:$0xff]
      %v159 = vld [vmem:[%s139 + $0x60] sm:$0xff]
      %v160 = vld [vmem:[%s139 + $0x68] sm:$0xff]
      %v161 = vld [vmem:[%s139 + $0x70] sm:$0xff]
      %v162 = vld [vmem:[%s139 + $0x78] sm:$0xff]
      %v163 = vld [vmem:[%s1] sm:$0xff]
      %v164 = vld [vmem:[%s1 + $0x8] sm:$0xff]
      %v165 = vld [vmem:[%s1 + $0x10] sm:$0xff]
      %v166 = vld [vmem:[%s1 + $0x18] sm:$0xff]
      %v167 = vld [vmem:[%s1 + $0x20] sm:$0xff]
      %v168 = vld [vmem:[%s1 + $0x28] sm:$0xff]
      %v169 = vld [vmem:[%s1 + $0x30] sm:$0xff]
      %v170 = vld [vmem:[%s1 + $0x38] sm:$0xff]
      %v171 = vld [vmem:[%s1 + $0x40] sm:$0xff]
      %v172 = vld [vmem:[%s1 + $0x48] sm:$0xff]
      %v173 = vlaneseq
      %v174 = vshrl.u32 %v173, 7
      %v175 = vsub.s32 0, %v174
      %v176 = vrot.slane %v164, %v175
      %vm177 = vcmask 64512
      %v179 = vsel %vm177, %v147, 0
      %v182 = vsel %vm177, %v148, 0
      %v185 = vsel %vm177, %v149, 0
      %v188 = vsel %vm177, %v150, 0
      %v191 = vsel %vm177, %v151, 0
      %v194 = vsel %vm177, %v152, 0
      %v197 = vsel %vm177, %v153, 0
      %v200 = vsel %vm177, %v154, 0
      %v203 = vsel %vm177, %v155, 0
      %v206 = vsel %vm177, %v156, 0
      %v209 = vsel %vm177, %v157, 0
      %v212 = vsel %vm177, %v158, 0
      %v215 = vsel %vm177, %v159, 0
      %v218 = vsel %vm177, %v160, 0
      %v221 = vsel %vm177, %v161, 0
      %v224 = vsel %vm177, %v162, 0
      %226 = vmatprep.subr.mxu0 0.0
      %227 = vmatpush1.msra.mxu0 %v163
      %228 = vmatprep.subr.mxu0 0.0
      %229 = vmatpush1.msra.mxu0 0.0
      %230 = vmatprep.subr.mxu0 0.0
      %231 = vmatpush1.msra.mxu0 0.0
      %232 = vmatprep.subr.mxu0 0.0
      %233 = vmatpush1.msra.mxu0 0.0
      %234 = vmatprep.subr.mxu0 0.0
      %235 = vmatpush1.msra.mxu0 0.0
      %236 = vmatprep.subr.mxu0 0.0
      %237 = vmatpush1.msra.mxu0 0.0
      %238 = vmatprep.subr.mxu0 0.0
      %239 = vmatpush1.msra.mxu0 0.0
      %240 = vmatprep.subr.mxu0 0.0
      %241 = vmatpush1.msra.mxu0 0.0
      %242 = vmatprep.subr.mxu0 0.0
      %243 = vmatpush1.msra.mxu0 0.0
      %244 = vmatprep.subr.mxu0 0.0
      %245 = vmatpush1.msra.mxu0 0.0
      %246 = vmatprep.subr.mxu0 0.0
      %247 = vmatpush1.msra.mxu0 0.0
      %248 = vmatprep.subr.mxu0 0.0
      %249 = vmatpush1.msra.mxu0 0.0
      %250 = vmatprep.subr.mxu0 0.0
      %251 = vmatpush1.msra.mxu0 0.0
      %252 = vmatprep.subr.mxu0 0.0
      %253 = vmatpush1.msra.mxu0 0.0
      %254 = vmatprep.subr.mxu0 0.0
      %255 = vmatpush1.msra.mxu0 0.0
      %256 = vmatprep.subr.mxu0 0.0
      %257 = vmatpush1.msra.mxu0 0.0
      %258 = vmatprep.subr.mxu0 0.0
      %259 = vmatpush1.msra.mxu0 0.0
      %260 = vmatprep.subr.mxu0 0.0
      %261 = vmatpush1.msra.mxu0 0.0
      %262 = vmatprep.subr.mxu0 0.0
      %263 = vmatpush1.msra.mxu0 0.0
      %264 = vmatprep.subr.mxu0 0.0
      %265 = vmatpush1.msra.mxu0 0.0
      %266 = vmatprep.subr.mxu0 0.0
      %267 = vmatpush1.msra.mxu0 0.0
      %268 = vmatprep.subr.mxu0 0.0
      %269 = vmatpush1.msra.mxu0 0.0
      %270 = vmatprep.subr.mxu0 0.0
      %271 = vmatpush1.msra.mxu0 0.0
      %272 = vmatprep.subr.mxu0 0.0
      %273 = vmatpush1.msra.mxu0 0.0
      %274 = vmatprep.subr.mxu0 0.0
      %275 = vmatpush1.msra.mxu0 0.0
      %276 = vmatprep.subr.mxu0 0.0
      %277 = vmatpush1.msra.mxu0 0.0
      %278 = vmatprep.subr.mxu0 0.0
      %279 = vmatpush1.msra.mxu0 0.0
      %280 = vmatprep.subr.mxu0 0.0
      %281 = vmatpush1.msra.mxu0 0.0
      %282 = vmatprep.subr.mxu0 0.0
      %283 = vmatpush1.msra.mxu0 0.0
      %284 = vmatprep.subr.mxu0 0.0
      %285 = vmatpush1.msra.mxu0 0.0
      %286 = vmatprep.subr.mxu0 0.0
      %287 = vmatpush1.msra.mxu0 0.0
      %288 = vmatprep.subr.mxu0 0.0
      %289 = vmatpush1.msra.mxu0 0.0
      %290 = vmatprep.mubr.f32.mxu0 0.0
      %291 = vmatmul.mubr.f32.gmra.mrb[0].mxu0 %v179
      %v292 = vpop.f32.mrb[0].mxu0
      %v293 = vadd.f32 %v176, %v292
      %v294 = vpop.f32.mrb[0].mxu0
      %295 = vmatprep.mubr.f32.mxu0 0.0
      %296 = vmatmul.mubr.f32.gmra.mrb[0].mxu0 %v182
      %v297 = vpop.f32.mrb[0].mxu0
      %v298 = vadd.f32 %v176, %v297
      %v299 = vpop.f32.mrb[0].mxu0
      %300 = vmatprep.mubr.f32.mxu0 0.0
      %301 = vmatmul.mubr.f32.gmra.mrb[0].mxu0 %v185
      %v302 = vpop.f32.mrb[0].mxu0
      %v303 = vadd.f32 %v176, %v302
      %v304 = vpop.f32.mrb[0].mxu0
      %305 = vmatprep.mubr.f32.mxu0 0.0
      %306 = vmatmul.mubr.f32.gmra.mrb[0].mxu0 %v188
      %v307 = vpop.f32.mrb[0].mxu0
      %v308 = vadd.f32 %v176, %v307
      %v309 = vpop.f32.mrb[0].mxu0
      %310 = vmatprep.mubr.f32.mxu0 0.0
      %311 = vmatmul.mubr.f32.gmra.mrb[0].mxu0 %v191
      %v312 = vpop.f32.mrb[0].mxu0
      %v313 = vadd.f32 %v176, %v312
      %v314 = vpop.f32.mrb[0].mxu0
      %315 = vmatprep.mubr.f32.mxu0 0.0
      %316 = vmatmul.mubr.f32.gmra.mrb[0].mxu0 %v194
      %v317 = vpop.f32.mrb[0].mxu0
      %v318 = vadd.f32 %v176, %v317
      %v319 = vpop.f32.mrb[0].mxu0
      %320 = vmatprep.mubr.f32.mxu0 0.0
      %321 = vmatmul.mubr.f32.gmra.mrb[0].mxu0 %v197
      %v322 = vpop.f32.mrb[0].mxu0
      %v323 = vadd.f32 %v176, %v322
      %v324 = vpop.f32.mrb[0].mxu0
      %325 = vmatprep.mubr.f32.mxu0 0.0
      %326 = vmatmul.mubr.f32.gmra.mrb[0].mxu0 %v200
      %v327 = vpop.f32.mrb[0].mxu0
      %v328 = vadd.f32 %v176, %v327
      %v329 = vpop.f32.mrb[0].mxu0
      %330 = vmatprep.mubr.f32.mxu0 0.0
      %331 = vmatmul.mubr.f32.gmra.mrb[0].mxu0 %v203
      %v332 = vpop.f32.mrb[0].mxu0
      %v333 = vadd.f32 %v176, %v332
      %v334 = vpop.f32.mrb[0].mxu0
      %335 = vmatprep.mubr.f32.mxu0 0.0
      %336 = vmatmul.mubr.f32.gmra.mrb[0].mxu0 %v206
      %v337 = vpop.f32.mrb[0].mxu0
      %v338 = vadd.f32 %v176, %v337
      %v339 = vpop.f32.mrb[0].mxu0
      %340 = vmatprep.mubr.f32.mxu0 0.0
      %341 = vmatmul.mubr.f32.gmra.mrb[0].mxu0 %v209
      %v342 = vpop.f32.mrb[0].mxu0
      %v343 = vadd.f32 %v176, %v342
      %v344 = vpop.f32.mrb[0].mxu0
      %345 = vmatprep.mubr.f32.mxu0 0.0
      %346 = vmatmul.mubr.f32.gmra.mrb[0].mxu0 %v212
      %v347 = vpop.f32.mrb[0].mxu0
      %v348 = vadd.f32 %v176, %v347
      %v349 = vpop.f32.mrb[0].mxu0
      %350 = vmatprep.mubr.f32.mxu0 0.0
      %351 = vmatmul.mubr.f32.gmra.mrb[0].mxu0 %v215
      %v352 = vpop.f32.mrb[0].mxu0
      %v353 = vadd.f32 %v176, %v352
      %v354 = vpop.f32.mrb[0].mxu0
      %355 = vmatprep.mubr.f32.mxu0 0.0
      %356 = vmatmul.mubr.f32.gmra.mrb[0].mxu0 %v218
      %v357 = vpop.f32.mrb[0].mxu0
      %v358 = vadd.f32 %v176, %v357
      %v359 = vpop.f32.mrb[0].mxu0
      %360 = vmatprep.mubr.f32.mxu0 0.0
      %361 = vmatmul.mubr.f32.gmra.mrb[0].mxu0 %v221
      %v362 = vpop.f32.mrb[0].mxu0
      %v363 = vadd.f32 %v176, %v362
      %v364 = vpop.f32.mrb[0].mxu0
      %365 = vmatprep.mubr.f32.mxu0 0.0
      %366 = vmatmul.mubr.f32.gmra.mrb[0].mxu0 %v224
      %v367 = vpop.f32.mrb[0].mxu0
      %v368 = vadd.f32 %v176, %v367
      %v369 = vpop.f32.mrb[0].mxu0
      %370 = vdwg.mxu0
      %v371 = vmax.f32 %v293, 0.0
      %v372 = vmax.f32 %v298, 0.0
      %v373 = vmax.f32 %v303, 0.0
      %v374 = vmax.f32 %v308, 0.0
      %v375 = vmax.f32 %v313, 0.0
      %v376 = vmax.f32 %v318, 0.0
      %v377 = vmax.f32 %v323, 0.0
      %v378 = vmax.f32 %v328, 0.0
      %v379 = vmax.f32 %v333, 0.0
      %v380 = vmax.f32 %v338, 0.0
      %v381 = vmax.f32 %v343, 0.0
      %v382 = vmax.f32 %v348, 0.0
      %v383 = vmax.f32 %v353, 0.0
      %v384 = vmax.f32 %v358, 0.0
      %v385 = vmax.f32 %v363, 0.0
      %v386 = vmax.f32 %v368, 0.0
      %v387 = vlaneseq
      %v388 = vshrl.u32 %v387, 7
      %v389 = vsub.s32 1, %v388
      %v390 = vrot.slane %v164, %v389
      %vm391 = vcmask 261120
      %v393 = vsel %vm391, %v371, 0
      %v396 = vsel %vm391, %v372, 0
      %v399 = vsel %vm391, %v373, 0
      %v402 = vsel %vm391, %v374, 0
      %v405 = vsel %vm391, %v375, 0
      %v408 = vsel %vm391, %v376, 0
      %v411 = vsel %vm391, %v377, 0
      %v414 = vsel %vm391, %v378, 0
      %v417 = vsel %vm391, %v379, 0
      %v420 = vsel %vm391, %v380, 0
      %v423 = vsel %vm391, %v381, 0
      %v426 = vsel %vm391, %v382, 0
      %v429 = vsel %vm391, %v383, 0
      %v432 = vsel %vm391, %v384, 0
      %v435 = vsel %vm391, %v385, 0
      %v438 = vsel %vm391, %v386, 0
      %440 = vmatprep.subr.mxu0 0.0
      %441 = vmatpush1.msra.mxu0 %v165
      %442 = vmatprep.subr.mxu0 0.0
      %443 = vmatpush1.msra.mxu0 %v166
      %444 = vmatprep.subr.mxu0 0.0
      %445 = vmatpush1.msra.mxu0 %v167
      %446 = vmatprep.subr.mxu0 0.0
      %447 = vmatpush1.msra.mxu0 %v168
      %448 = vmatprep.subr.mxu0 0.0
      %449 = vmatpush1.msra.mxu0 0.0
      %450 = vmatprep.subr.mxu0 0.0
      %451 = vmatpush1.msra.mxu0 0.0
      %452 = vmatprep.subr.mxu0 0.0
      %453 = vmatpush1.msra.mxu0 0.0
      %454 = vmatprep.subr.mxu0 0.0
      %455 = vmatpush1.msra.mxu0 0.0
      %456 = vmatprep.subr.mxu0 0.0
      %457 = vmatpush1.msra.mxu0 0.0
      %458 = vmatprep.subr.mxu0 0.0
      %459 = vmatpush1.msra.mxu0 0.0
      %460 = vmatprep.subr.mxu0 0.0
      %461 = vmatpush1.msra.mxu0 0.0
      %462 = vmatprep.subr.mxu0 0.0
      %463 = vmatpush1.msra.mxu0 0.0
      %464 = vmatprep.subr.mxu0 0.0
      %465 = vmatpush1.msra.mxu0 0.0
      %466 = vmatprep.subr.mxu0 0.0
      %467 = vmatpush1.msra.mxu0 0.0
      %468 = vmatprep.subr.mxu0 0.0
      %469 = vmatpush1.msra.mxu0 0.0
      %470 = vmatprep.subr.mxu0 0.0
      %471 = vmatpush1.msra.mxu0 0.0
      %472 = vmatprep.subr.mxu0 0.0
      %473 = vmatpush1.msra.mxu0 0.0
      %474 = vmatprep.subr.mxu0 0.0
      %475 = vmatpush1.msra.mxu0 0.0
      %476 = vmatprep.subr.mxu0 0.0
      %477 = vmatpush1.msra.mxu0 0.0
      %478 = vmatprep.subr.mxu0 0.0
      %479 = vmatpush1.msra.mxu0 0.0
      %480 = vmatprep.subr.mxu0 0.0
      %481 = vmatpush1.msra.mxu0 0.0
      %482 = vmatprep.subr.mxu0 0.0
      %483 = vmatpush1.msra.mxu0 0.0
      %484 = vmatprep.subr.mxu0 0.0
      %485 = vmatpush1.msra.mxu0 0.0
      %486 = vmatprep.subr.mxu0 0.0
      %487 = vmatpush1.msra.mxu0 0.0
      %488 = vmatprep.subr.mxu0 0.0
      %489 = vmatpush1.msra.mxu0 0.0
      %490 = vmatprep.subr.mxu0 0.0
      %491 = vmatpush1.msra.mxu0 0.0
      %492 = vmatprep.subr.mxu0 0.0
      %493 = vmatpush1.msra.mxu0 0.0
      %494 = vmatprep.subr.mxu0 0.0
      %495 = vmatpush1.msra.mxu0 0.0
      %496 = vmatprep.subr.mxu0 0.0
      %497 = vmatpush1.msra.mxu0 0.0
      %498 = vmatprep.subr.mxu0 0.0
      %499 = vmatpush1.msra.mxu0 0.0
      %500 = vmatprep.subr.mxu0 0.0
      %501 = vmatpush1.msra.mxu0 0.0
      %502 = vmatprep.subr.mxu0 0.0
      %503 = vmatpush1.msra.mxu0 0.0
      %504 = vmatprep.mubr.f32.mxu0 0.0
      %505 = vmatmul.mubr.f32.gmra.mrb[0].mxu0 %v393
      %v506 = vpop.f32.mrb[0].mxu0
      %v507 = vadd.f32 %v390, %v506
      %v508 = vpop.f32.mrb[0].mxu0
      %509 = vmatprep.mubr.f32.mxu0 0.0
      %510 = vmatmul.mubr.f32.gmra.mrb[0].mxu0 %v396
      %v511 = vpop.f32.mrb[0].mxu0
      %v512 = vadd.f32 %v390, %v511
      %v513 = vpop.f32.mrb[0].mxu0
      %514 = vmatprep.mubr.f32.mxu0 0.0
      %515 = vmatmul.mubr.f32.gmra.mrb[0].mxu0 %v399
      %v516 = vpop.f32.mrb[0].mxu0
      %v517 = vadd.f32 %v390, %v516
      %v518 = vpop.f32.mrb[0].mxu0
      %519 = vmatprep.mubr.f32.mxu0 0.0
      %520 = vmatmul.mubr.f32.gmra.mrb[0].mxu0 %v402
      %v521 = vpop.f32.mrb[0].mxu0
      %v522 = vadd.f32 %v390, %v521
      %v523 = vpop.f32.mrb[0].mxu0
      %524 = vmatprep.mubr.f32.mxu0 0.0
      %525 = vmatmul.mubr.f32.gmra.mrb[0].mxu0 %v405
      %v526 = vpop.f32.mrb[0].mxu0
      %v527 = vadd.f32 %v390, %v526
      %v528 = vpop.f32.mrb[0].mxu0
      %529 = vmatprep.mubr.f32.mxu0 0.0
      %530 = vmatmul.mubr.f32.gmra.mrb[0].mxu0 %v408
      %v531 = vpop.f32.mrb[0].mxu0
      %v532 = vadd.f32 %v390, %v531
      %v533 = vpop.f32.mrb[0].mxu0
      %534 = vmatprep.mubr.f32.mxu0 0.0
      %535 = vmatmul.mubr.f32.gmra.mrb[0].mxu0 %v411
      %v536 = vpop.f32.mrb[0].mxu0
      %v537 = vadd.f32 %v390, %v536
      %v538 = vpop.f32.mrb[0].mxu0
      %539 = vmatprep.mubr.f32.mxu0 0.0
      %540 = vmatmul.mubr.f32.gmra.mrb[0].mxu0 %v414
      %v541 = vpop.f32.mrb[0].mxu0
      %v542 = vadd.f32 %v390, %v541
      %v543 = vpop.f32.mrb[0].mxu0
      %544 = vmatprep.mubr.f32.mxu0 0.0
      %545 = vmatmul.mubr.f32.gmra.mrb[0].mxu0 %v417
      %v546 = vpop.f32.mrb[0].mxu0
      %v547 = vadd.f32 %v390, %v546
      %v548 = vpop.f32.mrb[0].mxu0
      %549 = vmatprep.mubr.f32.mxu0 0.0
      %550 = vmatmul.mubr.f32.gmra.mrb[0].mxu0 %v420
      %v551 = vpop.f32.mrb[0].mxu0
      %v552 = vadd.f32 %v390, %v551
      %v553 = vpop.f32.mrb[0].mxu0
      %554 = vmatprep.mubr.f32.mxu0 0.0
      %555 = vmatmul.mubr.f32.gmra.mrb[0].mxu0 %v423
      %v556 = vpop.f32.mrb[0].mxu0
      %v557 = vadd.f32 %v390, %v556
      %v558 = vpop.f32.mrb[0].mxu0
      %559 = vmatprep.mubr.f32.mxu0 0.0
      %560 = vmatmul.mubr.f32.gmra.mrb[0].mxu0 %v426
      %v561 = vpop.f32.mrb[0].mxu0
      %v562 = vadd.f32 %v390, %v561
      %v563 = vpop.f32.mrb[0].mxu0
      %564 = vmatprep.mubr.f32.mxu0 0.0
      %565 = vmatmul.mubr.f32.gmra.mrb[0].mxu0 %v429
      %v566 = vpop.f32.mrb[0].mxu0
      %v567 = vadd.f32 %v390, %v566
      %v568 = vpop.f32.mrb[0].mxu0
      %569 = vmatprep.mubr.f32.mxu0 0.0
      %570 = vmatmul.mubr.f32.gmra.mrb[0].mxu0 %v432
      %v571 = vpop.f32.mrb[0].mxu0
      %v572 = vadd.f32 %v390, %v571
      %v573 = vpop.f32.mrb[0].mxu0
      %574 = vmatprep.mubr.f32.mxu0 0.0
      %575 = vmatmul.mubr.f32.gmra.mrb[0].mxu0 %v435
      %v576 = vpop.f32.mrb[0].mxu0
      %v577 = vadd.f32 %v390, %v576
      %v578 = vpop.f32.mrb[0].mxu0
      %579 = vmatprep.mubr.f32.mxu0 0.0
      %580 = vmatmul.mubr.f32.gmra.mrb[0].mxu0 %v438
      %v581 = vpop.f32.mrb[0].mxu0
      %v582 = vadd.f32 %v390, %v581
      %v583 = vpop.f32.mrb[0].mxu0
      %584 = vdwg.mxu0
      %vm585 = vcmp.gt.f32.partialorder %v507, 0.0
      %vm586 = vcmp.gt.f32.partialorder %v512, 0.0
      %vm587 = vcmp.gt.f32.partialorder %v517, 0.0
      %vm588 = vcmp.gt.f32.partialorder %v522, 0.0
      %vm589 = vcmp.gt.f32.partialorder %v527, 0.0
      %vm590 = vcmp.gt.f32.partialorder %v532, 0.0
      %vm591 = vcmp.gt.f32.partialorder %v537, 0.0
      %vm592 = vcmp.gt.f32.partialorder %v542, 0.0
      %vm593 = vcmp.gt.f32.partialorder %v547, 0.0
      %vm594 = vcmp.gt.f32.partialorder %v552, 0.0
      %vm595 = vcmp.gt.f32.partialorder %v557, 0.0
      %vm596 = vcmp.gt.f32.partialorder %v562, 0.0
      %vm597 = vcmp.gt.f32.partialorder %v567, 0.0
      %vm598 = vcmp.gt.f32.partialorder %v572, 0.0
      %vm599 = vcmp.gt.f32.partialorder %v577, 0.0
      %vm600 = vcmp.gt.f32.partialorder %v582, 0.0
      %v601 = vmul.f32 %v507, 0.01
      %v602 = vmul.f32 %v512, 0.01
      %v603 = vmul.f32 %v517, 0.01
      %v604 = vmul.f32 %v522, 0.01
      %v605 = vmul.f32 %v527, 0.01
      %v606 = vmul.f32 %v532, 0.01
      %v607 = vmul.f32 %v537, 0.01
      %v608 = vmul.f32 %v542, 0.01
      %v609 = vmul.f32 %v547, 0.01
      %v610 = vmul.f32 %v552, 0.01
      %v611 = vmul.f32 %v557, 0.01
      %v612 = vmul.f32 %v562, 0.01
      %v613 = vmul.f32 %v567, 0.01
      %v614 = vmul.f32 %v572, 0.01
      %v615 = vmul.f32 %v577, 0.01
      %v616 = vmul.f32 %v582, 0.01
      %v617 = vsel %vm585, %v507, %v601
      %v618 = vsel %vm586, %v512, %v602
      %v619 = vsel %vm587, %v517, %v603
      %v620 = vsel %vm588, %v522, %v604
      %v621 = vsel %vm589, %v527, %v605
      %v622 = vsel %vm590, %v532, %v606
      %v623 = vsel %vm591, %v537, %v607
      %v624 = vsel %vm592, %v542, %v608
      %v625 = vsel %vm593, %v547, %v609
      %v626 = vsel %vm594, %v552, %v610
      %v627 = vsel %vm595, %v557, %v611
      %v628 = vsel %vm596, %v562, %v612
      %v629 = vsel %vm597, %v567, %v613
      %v630 = vsel %vm598, %v572, %v614
      %v631 = vsel %vm599, %v577, %v615
      %v632 = vsel %vm600, %v582, %v616
      %v633 = vlaneseq
      %v634 = vshrl.u32 %v633, 7
      %v635 = vsub.s32 2, %v634
      %v636 = vrot.slane %v164, %v635
      %v638 = vsel %vm391, %v617, 0
      %v641 = vsel %vm391, %v618, 0
      %v644 = vsel %vm391, %v619, 0
      %v647 = vsel %vm391, %v620, 0
      %v650 = vsel %vm391, %v621, 0
      %v653 = vsel %vm391, %v622, 0
      %v656 = vsel %vm391, %v623, 0
      %v659 = vsel %vm391, %v624, 0
      %v662 = vsel %vm391, %v625, 0
      %v665 = vsel %vm391, %v626, 0
      %v668 = vsel %vm391, %v627, 0
      %v671 = vsel %vm391, %v628, 0
      %v674 = vsel %vm391, %v629, 0
      %v677 = vsel %vm391, %v630, 0
      %v680 = vsel %vm391, %v631, 0
      %v683 = vsel %vm391, %v632, 0
      %685 = vmatprep.subr.mxu0 0.0
      %686 = vmatpush1.msra.mxu0 %v169
      %687 = vmatprep.subr.mxu0 0.0
      %688 = vmatpush1.msra.mxu0 %v170
      %689 = vmatprep.subr.mxu0 0.0
      %690 = vmatpush1.msra.mxu0 %v171
      %691 = vmatprep.subr.mxu0 0.0
      %692 = vmatpush1.msra.mxu0 %v172
      %693 = vmatprep.subr.mxu0 0.0
      %694 = vmatpush1.msra.mxu0 0.0
      %695 = vmatprep.subr.mxu0 0.0
      %696 = vmatpush1.msra.mxu0 0.0
      %697 = vmatprep.subr.mxu0 0.0
      %698 = vmatpush1.msra.mxu0 0.0
      %699 = vmatprep.subr.mxu0 0.0
      %700 = vmatpush1.msra.mxu0 0.0
      %701 = vmatprep.subr.mxu0 0.0
      %702 = vmatpush1.msra.mxu0 0.0
      %703 = vmatprep.subr.mxu0 0.0
      %704 = vmatpush1.msra.mxu0 0.0
      %705 = vmatprep.subr.mxu0 0.0
      %706 = vmatpush1.msra.mxu0 0.0
      %707 = vmatprep.subr.mxu0 0.0
      %708 = vmatpush1.msra.mxu0 0.0
      %709 = vmatprep.subr.mxu0 0.0
      %710 = vmatpush1.msra.mxu0 0.0
      %711 = vmatprep.subr.mxu0 0.0
      %712 = vmatpush1.msra.mxu0 0.0
      %713 = vmatprep.subr.mxu0 0.0
      %714 = vmatpush1.msra.mxu0 0.0
      %715 = vmatprep.subr.mxu0 0.0
      %716 = vmatpush1.msra.mxu0 0.0
      %717 = vmatprep.subr.mxu0 0.0
      %718 = vmatpush1.msra.mxu0 0.0
      %719 = vmatprep.subr.mxu0 0.0
      %720 = vmatpush1.msra.mxu0 0.0
      %721 = vmatprep.subr.mxu0 0.0
      %722 = vmatpush1.msra.mxu0 0.0
      %723 = vmatprep.subr.mxu0 0.0
      %724 = vmatpush1.msra.mxu0 0.0
      %725 = vmatprep.subr.mxu0 0.0
      %726 = vmatpush1.msra.mxu0 0.0
      %727 = vmatprep.subr.mxu0 0.0
      %728 = vmatpush1.msra.mxu0 0.0
      %729 = vmatprep.subr.mxu0 0.0
      %730 = vmatpush1.msra.mxu0 0.0
      %731 = vmatprep.subr.mxu0 0.0
      %732 = vmatpush1.msra.mxu0 0.0
      %733 = vmatprep.subr.mxu0 0.0
      %734 = vmatpush1.msra.mxu0 0.0
      %735 = vmatprep.subr.mxu0 0.0
      %736 = vmatpush1.msra.mxu0 0.0
      %737 = vmatprep.subr.mxu0 0.0
      %738 = vmatpush1.msra.mxu0 0.0
      %739 = vmatprep.subr.mxu0 0.0
      %740 = vmatpush1.msra.mxu0 0.0
      %741 = vmatprep.subr.mxu0 0.0
      %742 = vmatpush1.msra.mxu0 0.0
      %743 = vmatprep.subr.mxu0 0.0
      %744 = vmatpush1.msra.mxu0 0.0
      %745 = vmatprep.subr.mxu0 0.0
      %746 = vmatpush1.msra.mxu0 0.0
      %747 = vmatprep.subr.mxu0 0.0
      %748 = vmatpush1.msra.mxu0 0.0
      %749 = vmatprep.mubr.f32.mxu0 0.0
      %750 = vmatmul.mubr.f32.gmra.mrb[0].mxu0 %v638
      %v751 = vpop.f32.mrb[0].mxu0
      %v752 = vadd.f32 %v636, %v751
      %v753 = vpop.f32.mrb[0].mxu0
      %754 = vmatprep.mubr.f32.mxu0 0.0
      %755 = vmatmul.mubr.f32.gmra.mrb[0].mxu0 %v641
      %v756 = vpop.f32.mrb[0].mxu0
      %v757 = vadd.f32 %v636, %v756
      %v758 = vpop.f32.mrb[0].mxu0
      %759 = vmatprep.mubr.f32.mxu0 0.0
      %760 = vmatmul.mubr.f32.gmra.mrb[0].mxu0 %v644
      %v761 = vpop.f32.mrb[0].mxu0
      %v762 = vadd.f32 %v636, %v761
      %v763 = vpop.f32.mrb[0].mxu0
      %764 = vmatprep.mubr.f32.mxu0 0.0
      %765 = vmatmul.mubr.f32.gmra.mrb[0].mxu0 %v647
      %v766 = vpop.f32.mrb[0].mxu0
      %v767 = vadd.f32 %v636, %v766
      %v768 = vpop.f32.mrb[0].mxu0
      %769 = vmatprep.mubr.f32.mxu0 0.0
      %770 = vmatmul.mubr.f32.gmra.mrb[0].mxu0 %v650
      %v771 = vpop.f32.mrb[0].mxu0
      %v772 = vadd.f32 %v636, %v771
      %v773 = vpop.f32.mrb[0].mxu0
      %774 = vmatprep.mubr.f32.mxu0 0.0
      %775 = vmatmul.mubr.f32.gmra.mrb[0].mxu0 %v653
      %v776 = vpop.f32.mrb[0].mxu0
      %v777 = vadd.f32 %v636, %v776
      %v778 = vpop.f32.mrb[0].mxu0
      %779 = vmatprep.mubr.f32.mxu0 0.0
      %780 = vmatmul.mubr.f32.gmra.mrb[0].mxu0 %v656
      %v781 = vpop.f32.mrb[0].mxu0
      %v782 = vadd.f32 %v636, %v781
      %v783 = vpop.f32.mrb[0].mxu0
      %784 = vmatprep.mubr.f32.mxu0 0.0
      %785 = vmatmul.mubr.f32.gmra.mrb[0].mxu0 %v659
      %v786 = vpop.f32.mrb[0].mxu0
      %v787 = vadd.f32 %v636, %v786
      %v788 = vpop.f32.mrb[0].mxu0
      %789 = vmatprep.mubr.f32.mxu0 0.0
      %790 = vmatmul.mubr.f32.gmra.mrb[0].mxu0 %v662
      %v791 = vpop.f32.mrb[0].mxu0
      %v792 = vadd.f32 %v636, %v791
      %v793 = vpop.f32.mrb[0].mxu0
      %794 = vmatprep.mubr.f32.mxu0 0.0
      %795 = vmatmul.mubr.f32.gmra.mrb[0].mxu0 %v665
      %v796 = vpop.f32.mrb[0].mxu0
      %v797 = vadd.f32 %v636, %v796
      %v798 = vpop.f32.mrb[0].mxu0
      %799 = vmatprep.mubr.f32.mxu0 0.0
      %800 = vmatmul.mubr.f32.gmra.mrb[0].mxu0 %v668
      %v801 = vpop.f32.mrb[0].mxu0
      %v802 = vadd.f32 %v636, %v801
      %v803 = vpop.f32.mrb[0].mxu0
      %804 = vmatprep.mubr.f32.mxu0 0.0
      %805 = vmatmul.mubr.f32.gmra.mrb[0].mxu0 %v671
      %v806 = vpop.f32.mrb[0].mxu0
      %v807 = vadd.f32 %v636, %v806
      %v808 = vpop.f32.mrb[0].mxu0
      %809 = vmatprep.mubr.f32.mxu0 0.0
      %810 = vmatmul.mubr.f32.gmra.mrb[0].mxu0 %v674
      %v811 = vpop.f32.mrb[0].mxu0
      %v812 = vadd.f32 %v636, %v811
      %v813 = vpop.f32.mrb[0].mxu0
      %814 = vmatprep.mubr.f32.mxu0 0.0
      %815 = vmatmul.mubr.f32.gmra.mrb[0].mxu0 %v677
      %v816 = vpop.f32.mrb[0].mxu0
      %v817 = vadd.f32 %v636, %v816
      %v818 = vpop.f32.mrb[0].mxu0
      %819 = vmatprep.mubr.f32.mxu0 0.0
      %820 = vmatmul.mubr.f32.gmra.mrb[0].mxu0 %v680
      %v821 = vpop.f32.mrb[0].mxu0
      %v822 = vadd.f32 %v636, %v821
      %v823 = vpop.f32.mrb[0].mxu0
      %824 = vmatprep.mubr.f32.mxu0 0.0
      %825 = vmatmul.mubr.f32.gmra.mrb[0].mxu0 %v683
      %v826 = vpop.f32.mrb[0].mxu0
      %v827 = vadd.f32 %v636, %v826
      %v828 = vpop.f32.mrb[0].mxu0
      %829 = vdwg.mxu0
      %830 = vmax.xlane.f32.xlu0 %v752
      %v831 = vpop.xlane.xlu0 %830
      %832 = vmax.xlane.f32.xlu0 %v757
      %v833 = vpop.xlane.xlu0 %832
      %834 = vmax.xlane.f32.xlu0 %v762
      %v835 = vpop.xlane.xlu0 %834
      %836 = vmax.xlane.f32.xlu0 %v767
      %v837 = vpop.xlane.xlu0 %836
      %838 = vmax.xlane.f32.xlu0 %v772
      %v839 = vpop.xlane.xlu0 %838
      %840 = vmax.xlane.f32.xlu0 %v777
      %v841 = vpop.xlane.xlu0 %840
      %842 = vmax.xlane.f32.xlu0 %v782
      %v843 = vpop.xlane.xlu0 %842
      %844 = vmax.xlane.f32.xlu0 %v787
      %v845 = vpop.xlane.xlu0 %844
      %846 = vmax.xlane.f32.xlu0 %v792
      %v847 = vpop.xlane.xlu0 %846
      %848 = vmax.xlane.f32.xlu0 %v797
      %v849 = vpop.xlane.xlu0 %848
      %850 = vmax.xlane.f32.xlu0 %v802
      %v851 = vpop.xlane.xlu0 %850
      %852 = vmax.xlane.f32.xlu0 %v807
      %v853 = vpop.xlane.xlu0 %852
      %854 = vmax.xlane.f32.xlu0 %v812
      %v855 = vpop.xlane.xlu0 %854
      %856 = vmax.xlane.f32.xlu0 %v817
      %v857 = vpop.xlane.xlu0 %856
      %858 = vmax.xlane.f32.xlu0 %v822
      %v859 = vpop.xlane.xlu0 %858
      %860 = vmax.xlane.f32.xlu0 %v827
      %v861 = vpop.xlane.xlu0 %860
      %v862 = vsub.f32 %v752, %v831
      %v863 = vsub.f32 %v757, %v833
      %v864 = vsub.f32 %v762, %v835
      %v865 = vsub.f32 %v767, %v837
      %v866 = vsub.f32 %v772, %v839
      %v867 = vsub.f32 %v777, %v841
      %v868 = vsub.f32 %v782, %v843
      %v869 = vsub.f32 %v787, %v845
      %v870 = vsub.f32 %v792, %v847
      %v871 = vsub.f32 %v797, %v849
      %v872 = vsub.f32 %v802, %v851
      %v873 = vsub.f32 %v807, %v853
      %v874 = vsub.f32 %v812, %v855
      %v875 = vsub.f32 %v817, %v857
      %v876 = vsub.f32 %v822, %v859
      %v877 = vsub.f32 %v827, %v861
      %v878 = vmul.f32 %v862, 1.442695
      %v879 = vpow.pop %v878
      %v880 = vmul.f32 %v863, 1.442695
      %v881 = vpow.pop %v880
      %v882 = vmul.f32 %v864, 1.442695
      %v883 = vpow.pop %v882
      %v884 = vmul.f32 %v865, 1.442695
      %v885 = vpow.pop %v884
      %v886 = vmul.f32 %v866, 1.442695
      %v887 = vpow.pop %v886
      %v888 = vmul.f32 %v867, 1.442695
      %v889 = vpow.pop %v888
      %v890 = vmul.f32 %v868, 1.442695
      %v891 = vpow.pop %v890
      %v892 = vmul.f32 %v869, 1.442695
      %v893 = vpow.pop %v892
      %v894 = vmul.f32 %v870, 1.442695
      %v895 = vpow.pop %v894
      %v896 = vmul.f32 %v871, 1.442695
      %v897 = vpow.pop %v896
      %v898 = vmul.f32 %v872, 1.442695
      %v899 = vpow.pop %v898
      %v900 = vmul.f32 %v873, 1.442695
      %v901 = vpow.pop %v900
      %v902 = vmul.f32 %v874, 1.442695
      %v903 = vpow.pop %v902
      %v904 = vmul.f32 %v875, 1.442695
      %v905 = vpow.pop %v904
      %v906 = vmul.f32 %v876, 1.442695
      %v907 = vpow.pop %v906
      %v908 = vmul.f32 %v877, 1.442695
      %v909 = vpow.pop %v908
      %910 = vadd.xlane.f32.xlu0 %v879
      %v911 = vpop.xlane.xlu0 %910
      %912 = vadd.xlane.f32.xlu0 %v881
      %v913 = vpop.xlane.xlu0 %912
      %914 = vadd.xlane.f32.xlu0 %v883
      %v915 = vpop.xlane.xlu0 %914
      %916 = vadd.xlane.f32.xlu0 %v885
      %v917 = vpop.xlane.xlu0 %916
      %918 = vadd.xlane.f32.xlu0 %v887
      %v919 = vpop.xlane.xlu0 %918
      %920 = vadd.xlane.f32.xlu0 %v889
      %v921 = vpop.xlane.xlu0 %920
      %922 = vadd.xlane.f32.xlu0 %v891
      %v923 = vpop.xlane.xlu0 %922
      %924 = vadd.xlane.f32.xlu0 %v893
      %v925 = vpop.xlane.xlu0 %924
      %926 = vadd.xlane.f32.xlu0 %v895
      %v927 = vpop.xlane.xlu0 %926
      %928 = vadd.xlane.f32.xlu0 %v897
      %v929 = vpop.xlane.xlu0 %928
      %930 = vadd.xlane.f32.xlu0 %v899
      %v931 = vpop.xlane.xlu0 %930
      %932 = vadd.xlane.f32.xlu0 %v901
      %v933 = vpop.xlane.xlu0 %932
      %934 = vadd.xlane.f32.xlu0 %v903
      %v935 = vpop.xlane.xlu0 %934
      %936 = vadd.xlane.f32.xlu0 %v905
      %v937 = vpop.xlane.xlu0 %936
      %938 = vadd.xlane.f32.xlu0 %v907
      %v939 = vpop.xlane.xlu0 %938
      %940 = vadd.xlane.f32.xlu0 %v909
      %v941 = vpop.xlane.xlu0 %940
      %v942 = vrcp.pop %v911
      %v943 = vrcp.pop %v913
      %v944 = vrcp.pop %v915
      %v945 = vrcp.pop %v917
      %v946 = vrcp.pop %v919
      %v947 = vrcp.pop %v921
      %v948 = vrcp.pop %v923
      %v949 = vrcp.pop %v925
      %v950 = vrcp.pop %v927
      %v951 = vrcp.pop %v929
      %v952 = vrcp.pop %v931
      %v953 = vrcp.pop %v933
      %v954 = vrcp.pop %v935
      %v955 = vrcp.pop %v937
      %v956 = vrcp.pop %v939
      %v957 = vrcp.pop %v941
      %v958 = vmul.f32 %v911, %v942
      %v959 = vmul.f32 %v913, %v943
      %v960 = vmul.f32 %v915, %v944
      %v961 = vmul.f32 %v917, %v945
      %v962 = vmul.f32 %v919, %v946
      %v963 = vmul.f32 %v921, %v947
      %v964 = vmul.f32 %v923, %v948
      %v965 = vmul.f32 %v925, %v949
      %v966 = vmul.f32 %v927, %v950
      %v967 = vmul.f32 %v929, %v951
      %v968 = vmul.f32 %v931, %v952
      %v969 = vmul.f32 %v933, %v953
      %v970 = vmul.f32 %v935, %v954
      %v971 = vmul.f32 %v937, %v955
      %v972 = vmul.f32 %v939, %v956
      %v973 = vmul.f32 %v941, %v957
      %v974 = vsub.f32 2.0, %v958
      %v975 = vsub.f32 2.0, %v959
      %v976 = vsub.f32 2.0, %v960
      %v977 = vsub.f32 2.0, %v961
      %v978 = vsub.f32 2.0, %v962
      %v979 = vsub.f32 2.0, %v963
      %v980 = vsub.f32 2.0, %v964
      %v981 = vsub.f32 2.0, %v965
      %v982 = vsub.f32 2.0, %v966
      %v983 = vsub.f32 2.0, %v967
      %v984 = vsub.f32 2.0, %v968
      %v985 = vsub.f32 2.0, %v969
      %v986 = vsub.f32 2.0, %v970
      %v987 = vsub.f32 2.0, %v971
      %v988 = vsub.f32 2.0, %v972
      %v989 = vsub.f32 2.0, %v973
      %v990 = vmul.f32 %v942, %v974
      %v991 = vmul.f32 %v943, %v975
      %v992 = vmul.f32 %v944, %v976
      %v993 = vmul.f32 %v945, %v977
      %v994 = vmul.f32 %v946, %v978
      %v995 = vmul.f32 %v947, %v979
      %v996 = vmul.f32 %v948, %v980
      %v997 = vmul.f32 %v949, %v981
      %v998 = vmul.f32 %v950, %v982
      %v999 = vmul.f32 %v951, %v983
      %v1000 = vmul.f32 %v952, %v984
      %v1001 = vmul.f32 %v953, %v985
      %v1002 = vmul.f32 %v954, %v986
      %v1003 = vmul.f32 %v955, %v987
      %v1004 = vmul.f32 %v956, %v988
      %v1005 = vmul.f32 %v957, %v989
      %v1006 = vmul.f32 %v879, %v990
      %v1007 = vmul.f32 %v881, %v991
      %v1008 = vmul.f32 %v883, %v992
      %v1009 = vmul.f32 %v885, %v993
      %v1010 = vmul.f32 %v887, %v994
      %v1011 = vmul.f32 %v889, %v995
      %v1012 = vmul.f32 %v891, %v996
      %v1013 = vmul.f32 %v893, %v997
      %v1014 = vmul.f32 %v895, %v998
      %v1015 = vmul.f32 %v897, %v999
      %v1016 = vmul.f32 %v899, %v1000
      %v1017 = vmul.f32 %v901, %v1001
      %v1018 = vmul.f32 %v903, %v1002
      %v1019 = vmul.f32 %v905, %v1003
      %v1020 = vmul.f32 %v907, %v1004
      %v1021 = vmul.f32 %v909, %v1005
      %1022 = vst [vmem:[%s145] sm:$0xff] %v1006
      %1023 = vst [vmem:[%s145 + $0x8] sm:$0xff] %v1007
      %1024 = vst [vmem:[%s145 + $0x10] sm:$0xff] %v1008
      %1025 = vst [vmem:[%s145 + $0x18] sm:$0xff] %v1009
      %1026 = vst [vmem:[%s145 + $0x20] sm:$0xff] %v1010
      %1027 = vst [vmem:[%s145 + $0x28] sm:$0xff] %v1011
      %1028 = vst [vmem:[%s145 + $0x30] sm:$0xff] %v1012
      %1029 = vst [vmem:[%s145 + $0x38] sm:$0xff] %v1013
      %1030 = vst [vmem:[%s145 + $0x40] sm:$0xff] %v1014
      %1031 = vst [vmem:[%s145 + $0x48] sm:$0xff] %v1015
      %1032 = vst [vmem:[%s145 + $0x50] sm:$0xff] %v1016
      %1033 = vst [vmem:[%s145 + $0x58] sm:$0xff] %v1017
      %1034 = vst [vmem:[%s145 + $0x60] sm:$0xff] %v1018
      %1035 = vst [vmem:[%s145 + $0x68] sm:$0xff] %v1019
      %1036 = vst [vmem:[%s145 + $0x70] sm:$0xff] %v1020
      %1037 = vst [vmem:[%s145 + $0x78] sm:$0xff] %v1021
      %s1038 = smul.u32 16, %s13
      %p1039 = scmp.lt.s32.totalorder %s1038, 31
      %s1040 = scalar_select %p1039, %s1038, 31
      %s1041 = smul.addr %s1040, 8
      %s1042 = scalar_lea.vmem %s2, %s1041
      // Predicated region
      $region29: #{actor_forward.1} parent=27 // pred_check
        %p1043 = pneg %p78
      $region30: #{actor_forward.1} parent=27 // pred_check_branch
        %1045 = sbr.rel (%p1043) target = $region32
      $region31: #{actor_forward.1} parent=27 // pred_region
        %s1046 = smul.u32 16, %s13
      $region32: #{actor_forward.1} parent=27 // pred_fallthru
        _
    $region28: #{actor_forward.1} parent=5 // pred_fallthru
      _
    %p1047 = scmp.le.s32.totalorder 2, %s8
    // Predicated region
    $region33: #{actor_forward.1} parent=5 // pred_check
      %p1048 = pneg %p1047
    $region34: #{actor_forward.1} parent=5 // pred_check_branch
      %1050 = sbr.rel (%p1048) target = $region36
    $region35: #{actor_forward.1} parent=5 // pred_region
      %s1051 = ssub.s32 %s8, 2
      // Predicated region
      $region37: #{actor_forward.1} parent=35 // pred_check
        %p1052 = pneg %p84
      $region38: #{actor_forward.1} parent=35 // pred_check_branch
        %1054 = sbr.rel (%p1052) target = $region40
      $region39: #{actor_forward.1} parent=35 // pred_region
        %s1055 = smul.u32 16, %s14
        %p1056 = scmp.lt.s32.totalorder %s1055, 31
        %s1057 = scalar_select %p1056, %s1055, 31
        %s1058 = smul.addr %s1057, 8
        %s1059 = scalar_lea.vmem %s2, %s1058
      $region40: #{actor_forward.1} parent=35 // pred_fallthru
        _
    $region36: #{actor_forward.1} parent=5 // pred_fallthru
      _
  $region6: #{actor_forward.1} parent=0 // loop_footer
    %s12 = sadd.s32 1, %s8
  $region7: #{actor_forward.1} parent=0 // loop_footer_branch
    %7 = sbr.rel target = $region3
  $region8: #{actor_forward.1} parent=0 // loop_exit
    _

</llo_original>
